<compile_context>
chip_gen: v5e
topology: v5e:2x2
jax: 0.10.0
libtpu: 0.0.40
codegen_flags: <defaults>
</compile_context>

<pallas_src>
import jax
import jax.numpy as jnp
from jax.experimental import pallas as pl
from jax.experimental.pallas import tpu as pltpu

EPS = 1e-5


def _adain_kernel(style_ref, x_ref, o_ref):
    # style_ref: (2,) f32 in SMEM -> [style_mean, style_std]
    # x_ref / o_ref: (tile_n, D) blocks in VMEM.
    x = x_ref[...].astype(jnp.float32)
    d = x.shape[1]
    inv_d = jnp.float32(1.0 / d)
    inv_dm1 = jnp.float32(1.0 / (d - 1))

    patch_mean = jnp.sum(x, axis=1, keepdims=True) * inv_d          # [tile, 1]
    diff = x - patch_mean
    # torch.std uses the unbiased estimator (ddof=1) by default.
    var = jnp.sum(diff * diff, axis=1, keepdims=True) * inv_dm1     # [tile, 1]
    patch_std = jnp.sqrt(var) + EPS                                 # eps placement == torch

    # EUP approximate reciprocal + one Newton refinement on the [tile, 1]
    # column (negligible VPU cost at this shape, restores ~f32 accuracy).
    inv_std = pl.reciprocal(patch_std, approx=True)
    inv_std = inv_std * (2.0 - patch_std * inv_std)

    scale = inv_std * style_ref[1]                                  # fold style_std per row
    o_ref[...] = (diff * scale + style_ref[0]).astype(o_ref.dtype)


def _round_up(x, m):
    return ((x + m - 1) // m) * m


def scalar_adain(patch_features, style_mean, style_std, *,
                 max_tile_rows=2048, vmem_tile_budget_bytes=16 * 1024 * 1024):
    """patch_features: [N, D] float array; style_mean/style_std: python/0-d scalars."""
    n, d = patch_features.shape
    assert d >= 2, "unbiased std (ddof=1) requires D >= 2"

    dtype = patch_features.dtype
    itemsize = jnp.dtype(dtype).itemsize
    # Sublane packing: 8 rows/vreg for 4-byte dtypes, 16 for 2-byte, 32 for 1-byte.
    sublane = max(8, 32 // max(itemsize, 1))

    # Rows per tile bounded by a conservative VMEM budget (input + output,
    # each double-buffered by the pipeline => ~4x tile bytes resident).
    bytes_per_row = d * itemsize
    rows_budget = max(sublane, vmem_tile_budget_bytes // (4 * bytes_per_row))
    tile_n = min(_round_up(n, sublane), max_tile_rows, rows_budget)
    tile_n = max(sublane, (tile_n // sublane) * sublane)

    # Pad N up to a multiple of tile_n so every block is full.  Padded zero
    # rows are harmless (their output is just style_mean) and are sliced off.
    n_pad = _round_up(n, tile_n)
    x = patch_features
    if n_pad != n:
        x = jnp.pad(x, ((0, n_pad - n), (0, 0)))

    style = jnp.stack([
        jnp.asarray(style_mean, dtype=jnp.float32).reshape(()),
        jnp.asarray(style_std, dtype=jnp.float32).reshape(()),
    ])

    # TODO(synk): if D is ever not a multiple of 128, pad the lane dim on the
    # wrapper side (and mask the reduction) to keep output stores lane-dense.

    grid = (n_pad // tile_n,)
    out = pl.pallas_call(
        _adain_kernel,
        out_shape=jax.ShapeDtypeStruct((n_pad, d), dtype),
        grid_spec=pl.GridSpec(
            grid=grid,
            in_specs=[
                pl.BlockSpec(memory_space=pltpu.SMEM),              # packed style scalars
                pl.BlockSpec((tile_n, d), lambda i: (i, 0)),        # patch-row tile
            ],
            out_specs=pl.BlockSpec((tile_n, d), lambda i: (i, 0)),
        ),
        compiler_params=pltpu.CompilerParams(
            dimension_semantics=("parallel",),
        ),
    )(style, x)

    return out[:n] if n_pad != n else out


def _reference(patch_features, style_mean, style_std):
    x = patch_features.astype(jnp.float32)
    mean = jnp.mean(x, axis=1, keepdims=True)
    std = jnp.std(x, axis=1, keepdims=True, ddof=1) + EPS
    return ((x - mean) / std) * style_std + style_mean


if __name__ == "__main__":
    key = jax.random.PRNGKey(0)
    k1, k2 = jax.random.split(key, 2)

    style_mean = 0.75                    # scalar pseudo-style mean μ_k
    style_std = 2.25                     # scalar pseudo-style std  σ_k

    # Primary small shape consistent with [N, D] patch features.
    N, D = 16, 256
    patch_features = jax.random.normal(k1, (N, D), dtype=jnp.float32) * 3.0 + 1.5
    out = jax.block_until_ready(scalar_adain(patch_features, style_mean, style_std))
    ref = _reference(patch_features, style_mean, style_std)
    assert out.shape == (N, D)
    assert jnp.allclose(out, ref, atol=1e-4, rtol=1e-4), "mismatch vs reference"

    # Second check: N not a multiple of 8 (exercises the wrapper-side padding path).
    N2, D2 = 50, 384
    x2 = jax.random.normal(k2, (N2, D2), dtype=jnp.float32) * 0.5 - 2.0
    out2 = jax.block_until_ready(scalar_adain(x2, style_mean, style_std))
    ref2 = _reference(x2, style_mean, style_std)
    assert out2.shape == (N2, D2)
    assert jnp.allclose(out2, ref2, atol=1e-4, rtol=1e-4), "mismatch vs reference (padded N)"

    print("KERNEL_OK")
</pallas_src>

<mosaic_0001>
module attributes {stable_mosaic.version = 11 : i64} {
  func.func @_adain_kernel(%arg0: i32, %arg1: memref<2xf32, #tpu.memory_space<smem>>, %arg2: memref<16x256xf32, #tpu.memory_space<vmem>>, %arg3: memref<16x256xf32, #tpu.memory_space<vmem>>) attributes {dimension_semantics = [#tpu.dimension_semantics<parallel>], iteration_bounds = array<i64: 1>, scalar_prefetch = 0 : i64, scratch_operands = 0 : i64, tpu.core_type = #tpu.core_type<tc>, window_params = [{transform_indices = @transform_0, window_bounds = array<i64: 2>}, {transform_indices = @transform_1, window_bounds = array<i64: 16, 256>}, {transform_indices = @transform_2, window_bounds = array<i64: 16, 256>}]} {
    %c0 = arith.constant 0 : index
    %c0_0 = arith.constant 0 : index
    %0 = vector.load %arg2[%c0, %c0_0] : memref<16x256xf32, #tpu.memory_space<vmem>>, vector<16x256xf32>
    %cst = arith.constant dense<0.000000e+00> : vector<16xf32>
    %1 = vector.multi_reduction <add>, %0, %cst [1] : vector<16x256xf32> to vector<16xf32>
    %2 = vector.shape_cast %1 : vector<16xf32> to vector<16x1xf32>
    %cst_1 = arith.constant 3.906250e-03 : f32
    %3 = vector.broadcast %cst_1 : f32 to vector<16x1xf32>
    %4 = arith.mulf %2, %3 : vector<16x1xf32>
    %5 = vector.broadcast %4 : vector<16x1xf32> to vector<16x256xf32>
    %6 = arith.subf %0, %5 : vector<16x256xf32>
    %7 = arith.mulf %6, %6 : vector<16x256xf32>
    %cst_2 = arith.constant dense<0.000000e+00> : vector<16xf32>
    %8 = vector.multi_reduction <add>, %7, %cst_2 [1] : vector<16x256xf32> to vector<16xf32>
    %9 = vector.shape_cast %8 : vector<16xf32> to vector<16x1xf32>
    %cst_3 = arith.constant 0.00392156886 : f32
    %10 = vector.broadcast %cst_3 : f32 to vector<16x1xf32>
    %11 = arith.mulf %9, %10 : vector<16x1xf32>
    %12 = math.sqrt %11 : vector<16x1xf32>
    %cst_4 = arith.constant 9.99999974E-6 : f32
    %13 = vector.broadcast %cst_4 : f32 to vector<16x1xf32>
    %14 = arith.addf %12, %13 : vector<16x1xf32>
    %15 = tpu.reciprocal %14 {approx = true} : vector<16x1xf32> -> vector<16x1xf32>
    %16 = arith.mulf %14, %15 : vector<16x1xf32>
    %cst_5 = arith.constant 2.000000e+00 : f32
    %17 = vector.broadcast %cst_5 : f32 to vector<16x1xf32>
    %18 = arith.subf %17, %16 : vector<16x1xf32>
    %19 = arith.mulf %15, %18 : vector<16x1xf32>
    %c1 = arith.constant 1 : index
    %20 = memref.load %arg1[%c1] : memref<2xf32, #tpu.memory_space<smem>>
    %21 = vector.broadcast %20 : f32 to vector<16x1xf32>
    %22 = arith.mulf %19, %21 : vector<16x1xf32>
    %23 = vector.broadcast %22 : vector<16x1xf32> to vector<16x256xf32>
    %24 = arith.mulf %6, %23 : vector<16x256xf32>
    %c0_6 = arith.constant 0 : index
    %25 = memref.load %arg1[%c0_6] : memref<2xf32, #tpu.memory_space<smem>>
    %26 = vector.broadcast %25 : f32 to vector<16x256xf32>
    %27 = arith.addf %24, %26 : vector<16x256xf32>
    %c0_7 = arith.constant 0 : index
    %c0_8 = arith.constant 0 : index
    %28 = vector.load %arg3[%c0_7, %c0_8] : memref<16x256xf32, #tpu.memory_space<vmem>>, vector<16x256xf32>
    tpu.vector_store %arg3[%c0_7, %c0_8], %27 {strides = array<i32>} : memref<16x256xf32, #tpu.memory_space<vmem>>, vector<16x256xf32>,
    return
  }
  func.func @transform_0(%arg0: i32) -> i32 {
    %c0_i32 = arith.constant 0 : i32
    %c0_i32_0 = arith.constant 0 : i32
    return %c0_i32 : i32
  }
  func.func @transform_1(%arg0: i32) -> (i32, i32) {
    %c0_i32 = arith.constant 0 : i32
    %c0_i32_0 = arith.constant 0 : i32
    return %arg0, %c0_i32 : i32, i32
  }
  func.func @transform_2(%arg0: i32) -> (i32, i32) {
    %c0_i32 = arith.constant 0 : i32
    %c0_i32_0 = arith.constant 0 : i32
    return %arg0, %c0_i32 : i32, i32
  }
}

</mosaic_0001>

<llo_original>
// kernel: tpu_custom_call.1
$region0: #{tpu_custom_call.1}
  #allocation0 [shape = 'u32[]', space=smem, size = 0x4, offset = 0x4, fixed_abs, tag = 'smem constant byte address 0x4 - core index']
  #allocation1 [shape = 'u32[72,128]{1,0:T(1,128)}', space=vmem, size = 0x9000, scoped, tag = 'internal scratch']
  %s0 = inlined_call_operand.hbm [shape: f32[2], index: 0, kind: input, shape index: {}]
  %s1 = inlined_call_operand.hbm [shape: f32[16,256], index: 1, kind: input, shape index: {}]
  %s2 = inlined_call_operand.hbm [shape: f32[16,256], index: 2, kind: output, shape index: {}]
  %s3 = sld [smem:[#allocation0]]
  $region26: #{tpu_custom_call.1} parent=0
    _
  %s5 = ssub.s32 1, %s3
  %s6 = scalar_select 0, %s5, %s3
  $region1: #{tpu_custom_call.1} parent=0
    #allocation2 [shape = 'u8[512]{0}', space=smem, size = 0x200, scoped, tag = 'input window, operand 0, single buffered']
    #allocation3 [shape = 's32[1]{0}', space=sflag, size = 0x4, scoped, tag = 'scoped memory for tpu_custom_call.1']
    #allocation4 [shape = 's32[1]{0}', space=sflag, size = 0x4, scoped, tag = 'scoped memory for tpu_custom_call.1']
    #allocation5 [shape = 's32[1]{0}', space=sflag, size = 0x4, scoped, tag = 'scoped memory for tpu_custom_call.1']
    #allocation6 [shape = 'u8[16384]{0}', space=vmem, size = 0x4000, scoped, tag = 'input window, operand 1, single buffered']
    #allocation7 [shape = 'u8[16384]{0}', space=vmem, size = 0x4000, scoped, tag = 'output window, operand 0, single buffered']
    %7 = vsyncpa [#allocation5], 0
    %8 = vsyncpa [#allocation3], 0
    %9 = vsyncpa [#allocation4], 0
    // Predicated region
    $region2: #{tpu_custom_call.1} parent=1 // pred_check
      _
    $region3: #{tpu_custom_call.1} parent=1 // pred_check_branch
      %11 = sbr.rel (0) target = $region5
    $region4: #{tpu_custom_call.1} parent=1 // pred_region
      %13 = vsyncadd [#allocation5], 0
      %s15 = sshll.u32 %s0, 4
      %s16 = int_to_ptr.hbm [resolvable:$true] %s15
      %18 = dma.hbm_to_smem %s16, 16, [#allocation2], [#allocation5]
    $region5: #{tpu_custom_call.1} parent=1 // pred_fallthru
      _
    // Predicated region
    $region6: #{tpu_custom_call.1} parent=1 // pred_check
      _
    $region7: #{tpu_custom_call.1} parent=1 // pred_check_branch
      %20 = sbr.rel (0) target = $region9
    $region8: #{tpu_custom_call.1} parent=1 // pred_region
      %22 = vsyncadd [#allocation3], 0
      %s23 = sshll.u32 %s1, 4
      %s24 = int_to_ptr.hbm [resolvable:$true] %s23
      %s25 = sshll.u32 [#allocation6], 4
      %s26 = int_to_ptr.vmem [resolvable:$true] %s25
      %31 = dma.hbm_to_vmem [thread:$0]  %s24, 512, %s26, [#allocation3], 256, 256, 16
    $region9: #{tpu_custom_call.1} parent=1 // pred_fallthru
      _
    // Predicated region
    $region10: #{tpu_custom_call.1} parent=1 // pred_check
      _
    $region11: #{tpu_custom_call.1} parent=1 // pred_check_branch
      %33 = sbr.rel (0) target = $region13
    $region12: #{tpu_custom_call.1} parent=1 // pred_region
      %35 = dma.done [#allocation5], 16
    $region13: #{tpu_custom_call.1} parent=1 // pred_fallthru
      _
    // Predicated region
    $region14: #{tpu_custom_call.1} parent=1 // pred_check
      _
    $region15: #{tpu_custom_call.1} parent=1 // pred_check_branch
      %37 = sbr.rel (0) target = $region17
    $region16: #{tpu_custom_call.1} parent=1 // pred_region
      %39 = dma.done [#allocation3], 512
    $region17: #{tpu_custom_call.1} parent=1 // pred_fallthru
      _
    %40 = sfence
    %v41 = vld [vmem:[#allocation6] sm:$0xff]
    %v42 = vld [vmem:[#allocation6 + $0x8] sm:$0xff]
    %v43 = vld [vmem:[#allocation6 + $0x10] sm:$0xff]
    %v44 = vld [vmem:[#allocation6 + $0x18] sm:$0xff]
    %v45 = vadd.f32 %v41, %v42
    %46 = vadd.xlane.f32.xlu0 %v45
    %v47 = vpop.xlane.xlu0 %46
    %v48 = vadd.f32 %v43, %v44
    %49 = vadd.xlane.f32.xlu0 %v48
    %v50 = vpop.xlane.xlu0 %49
    %v51 = vmul.f32 %v47, 0.00390625
    %v52 = vmul.f32 %v50, 0.00390625
    %v53 = vsub.f32 %v41, %v51
    %v54 = vsub.f32 %v42, %v51
    %v55 = vsub.f32 %v43, %v52
    %v56 = vsub.f32 %v44, %v52
    %v57 = vmul.f32 %v53, %v53
    %v58 = vmul.f32 %v54, %v54
    %v59 = vmul.f32 %v55, %v55
    %v60 = vmul.f32 %v56, %v56
    %v61 = vadd.f32 %v57, %v58
    %62 = vadd.xlane.f32.xlu0 %v61
    %v63 = vpop.xlane.xlu0 %62
    %v64 = vadd.f32 %v59, %v60
    %65 = vadd.xlane.f32.xlu0 %v64
    %v66 = vpop.xlane.xlu0 %65
    %v67 = vmul.f32 %v63, 0.003921569
    %v68 = vmul.f32 %v66, 0.003921569
    %v69 = vrsqrt.pop %v67
    %v70 = vmul.f32 %v69, %v67
    %v71 = vmul.f32 %v70, %v69
    %v72 = vmul.f32 0.5, %v71
    %v73 = vsub.f32 1.5, %v72
    %v74 = vmul.f32 %v69, %v73
    %v75 = vmul.f32 %v67, %v74
    %vm76 = vcmp.eq.f32.partialorder %v67, inf
    %v77 = vsel %vm76, %v67, %v75
    %vm78 = vcmp.eq.f32.partialorder %v67, 0.0
    %v79 = vand.u32 %v67, 2147483648
    %v80 = vsel %vm78, %v79, %v77
    %v81 = vrsqrt.pop %v68
    %v82 = vmul.f32 %v81, %v68
    %v83 = vmul.f32 %v82, %v81
    %v84 = vmul.f32 0.5, %v83
    %v85 = vsub.f32 1.5, %v84
    %v86 = vmul.f32 %v81, %v85
    %v87 = vmul.f32 %v68, %v86
    %vm88 = vcmp.eq.f32.partialorder %v68, inf
    %v89 = vsel %vm88, %v68, %v87
    %vm90 = vcmp.eq.f32.partialorder %v68, 0.0
    %v91 = vand.u32 %v68, 2147483648
    %v92 = vsel %vm90, %v91, %v89
    %v93 = vadd.f32 %v80, 1e-05
    %v94 = vadd.f32 %v92, 1e-05
    %v95 = vrcp.pop %v93
    %v96 = vrcp.pop %v94
    %v97 = vmul.f32 %v93, %v95
    %v98 = vmul.f32 %v94, %v96
    %v99 = vsub.f32 2.0, %v97
    %v100 = vsub.f32 2.0, %v98
    %v101 = vmul.f32 %v95, %v99
    %v102 = vmul.f32 %v96, %v100
    %s103 = sld [smem:[#allocation2 + $0x1]]
    %v104 = vstv %s103
    %v105 = vmul.f32 %v101, %v104
    %v106 = vmul.f32 %v102, %v104
    %v107 = vmul.f32 %v53, %v105
    %v108 = vmul.f32 %v54, %v105
    %v109 = vmul.f32 %v55, %v106
    %v110 = vmul.f32 %v56, %v106
    %s111 = sld [smem:[#allocation2]]
    %v112 = vstv %s111
    %v113 = vadd.f32 %v107, %v112
    %v114 = vadd.f32 %v108, %v112
    %v115 = vadd.f32 %v109, %v112
    %v116 = vadd.f32 %v110, %v112
    %117 = vst [vmem:[#allocation7] sm:$0xff] %v113
    %118 = vst [vmem:[#allocation7 + $0x8] sm:$0xff] %v114
    %119 = vst [vmem:[#allocation7 + $0x10] sm:$0xff] %v115
    %120 = vst [vmem:[#allocation7 + $0x18] sm:$0xff] %v116
    // Predicated region
    $region18: #{tpu_custom_call.1} parent=1 // pred_check
      _
    $region19: #{tpu_custom_call.1} parent=1 // pred_check_branch
      %122 = sbr.rel (0) target = $region21
    $region20: #{tpu_custom_call.1} parent=1 // pred_region
      %124 = vsyncadd [#allocation4], 0
      %s125 = sshll.u32 [#allocation7], 4
      %s126 = int_to_ptr.vmem [resolvable:$true] %s125
      %s127 = sshll.u32 %s2, 4
      %s128 = int_to_ptr.hbm [resolvable:$true] %s127
      %133 = dma.vmem_to_hbm [thread:$0]  %s126, 512, %s128, [#allocation4], 256, 256, 16
    $region21: #{tpu_custom_call.1} parent=1 // pred_fallthru
      _
    // Predicated region
    $region22: #{tpu_custom_call.1} parent=1 // pred_check
      _
    $region23: #{tpu_custom_call.1} parent=1 // pred_check_branch
      %135 = sbr.rel (0) target = $region25
    $region24: #{tpu_custom_call.1} parent=1 // pred_region
      %137 = dma.done [#allocation4], 512
    $region25: #{tpu_custom_call.1} parent=1 // pred_fallthru
      _
    %138 = vsyncpa [#allocation3], 1
    %139 = vsyncpa [#allocation4], 1
    %140 = vsyncpa [#allocation5], 1

</llo_original>
